<compile_context>
chip_gen: v6e
topology: v6e:2x2x1
jax: 0.10.0
libtpu: 0.0.40
codegen_flags: <defaults>
</compile_context>

<pallas_src>
import functools

import jax
import jax.numpy as jnp
from jax import lax
from jax.experimental import pallas as pl
from jax.experimental.pallas import tpu as pltpu


_VMEM_LIMIT = 48 * 1024 * 1024  # explicit scoped-VMEM budget (fits v5e/v6e/v7x)


def _round_up(x, m):
    return (x + m - 1) // m * m


# ---------------------------------------------------------------------------
# Kernel A: variational head (Linear -> ReLU -> two lane-dense Linears),
#           reparameterisation, Wc projection (no bias) and KL divergence.
# ---------------------------------------------------------------------------
def varhead_kernel(h_ref, w1_ref, b1_ref, wmu_ref, bmu_ref, wlv_ref, blv_ref,
                   wc_ref, eps_ref,
                   mu_ref, logvar_ref, z_ref, proj_ref, kl_ref, *, b_real):
    h = h_ref[...]                                                    # (Bp, H)
    hid = jnp.dot(h, w1_ref[...], preferred_element_type=jnp.float32) + b1_ref[...]
    hid = jnp.maximum(hid, 0.0)                                       # ReLU
    # two lane-dense dots instead of one [H/2, 2C] dot + lane slicing
    mu = jnp.dot(hid, wmu_ref[...], preferred_element_type=jnp.float32) + bmu_ref[...]
    logvar = jnp.dot(hid, wlv_ref[...], preferred_element_type=jnp.float32) + blv_ref[...]
    z = mu + eps_ref[...] * jnp.exp(0.5 * logvar)                     # reparam trick
    proj = jnp.dot(z, wc_ref[...], preferred_element_type=jnp.float32)

    mu_ref[...] = mu
    logvar_ref[...] = logvar
    z_ref[...] = z
    proj_ref[...] = proj

    # KL = mean_b( -0.5 * sum_c(1 + logvar - mu^2 - exp(logvar)) ); padded
    # batch rows are masked out so biases can't pollute the mean.
    kl_elem = -0.5 * (1.0 + logvar - mu * mu - jnp.exp(logvar))
    row = lax.broadcasted_iota(jnp.int32, kl_elem.shape, 0)
    kl_elem = jnp.where(row < b_real, kl_elem, 0.0)
    kl_ref[0, 0] = jnp.sum(kl_elem) / float(b_real)


def run_varhead(decisive_h, w1, b1, w_mu, b_mu, w_lv, b_lv, wc_t, eps, *, b_real):
    Bp, H = decisive_h.shape
    C = wc_t.shape[0]
    vmem = pl.BlockSpec(memory_space=pltpu.MemorySpace.VMEM)
    smem = pl.BlockSpec(memory_space=pltpu.MemorySpace.SMEM)
    out_shape = (
        jax.ShapeDtypeStruct((Bp, C), jnp.float32),   # mu
        jax.ShapeDtypeStruct((Bp, C), jnp.float32),   # logvar
        jax.ShapeDtypeStruct((Bp, C), jnp.float32),   # z_star
        jax.ShapeDtypeStruct((Bp, H), jnp.float32),   # projected commitment
        jax.ShapeDtypeStruct((1, 1), jnp.float32),    # kl (scalar, SMEM)
    )
    return pl.pallas_call(
        functools.partial(varhead_kernel, b_real=int(b_real)),
        out_shape=out_shape,
        in_specs=[vmem] * 9,
        out_specs=[vmem, vmem, vmem, vmem, smem],
        compiler_params=pltpu.CompilerParams(vmem_limit_bytes=_VMEM_LIMIT),
    )(decisive_h, w1, b1, w_mu, b_mu, w_lv, b_lv, wc_t, eps)


# ---------------------------------------------------------------------------
# Kernel B: commitment-masked hidden update + lm_head matmul + fused shifted
#           cross-entropy (online logsumexp across the vocab grid axis).
# Grid = (B, S_pad // ts, V_pad // tn); vocab axis innermost ("arbitrary").
# ---------------------------------------------------------------------------
def lmhead_ce_kernel(h_ref, proj_ref, scale_ref, label_ref, w_ref,
                     logits_ref, nll_ref,
                     mh_scr, m_scr, l_scr, acc_scr,
                     *, tn, v_actual):
    vi = pl.program_id(2)
    nv = pl.num_programs(2)

    @pl.when(vi == 0)
    def _init():
        m_scr[...] = jnp.full(m_scr.shape, -jnp.inf, m_scr.dtype)
        l_scr[...] = jnp.zeros(l_scr.shape, l_scr.dtype)
        acc_scr[...] = jnp.zeros(acc_scr.shape, acc_scr.dtype)
        # commitment-masked hidden update, computed once per (b, s-tile) in
        # f32 on the VPU, then cast once for the MXU and cached in VMEM.
        modified = h_ref[0] + scale_ref[0] * proj_ref[0]          # (ts, H)
        mh_scr[...] = modified.astype(mh_scr.dtype)

    # single 2-D matmul per tile: (ts, H) @ (H, tn) -> f32 accumulation
    logits = jnp.dot(mh_scr[...], w_ref[...], preferred_element_type=jnp.float32)
    logits_ref[0] = logits.astype(logits_ref.dtype)

    ts = logits.shape[0]
    col = lax.broadcasted_iota(jnp.int32, (ts, tn), 1) + vi * tn
    if v_actual % tn != 0:          # static: mask zero-padded vocab columns
        masked = jnp.where(col < v_actual, logits, -jnp.inf)
    else:
        masked = logits

    labels = label_ref[0]                                          # (ts, 1) int32
    m_prev = m_scr[...]
    m_new = jnp.maximum(m_prev, jnp.max(masked, axis=1, keepdims=True))
    l_scr[...] = (jnp.exp(m_prev - m_new) * l_scr[...]
                  + jnp.sum(jnp.exp(masked - m_new), axis=1, keepdims=True))
    m_scr[...] = m_new
    onehot = (col == labels).astype(jnp.float32)                   # label < V always
    acc_scr[...] = acc_scr[...] + jnp.sum(logits * onehot, axis=1, keepdims=True)

    @pl.when(vi == nv - 1)
    def _finalize():
        lse = m_scr[...] + jnp.log(l_scr[...])
        nll = lse - acc_scr[...]
        # negative label => ignored position (shift tail / padding)
        nll_ref[0] = jnp.where(labels >= 0, nll, 0.0).astype(nll_ref.dtype)


def run_lmhead_ce(hidden, proj, commit_scale, shift_labels, wlm, *, ts, tn, v_actual):
    B, S_pad, H = hidden.shape
    V_pad = wlm.shape[1]
    grid = (B, S_pad // ts, V_pad // tn)

    out_shape = (
        jax.ShapeDtypeStruct((B, S_pad, V_pad), jnp.float32),   # final logits
        jax.ShapeDtypeStruct((B, S_pad, 1), jnp.float32),       # per-row CE (masked)
    )
    grid_spec = pltpu.PrefetchScalarGridSpec(
        num_scalar_prefetch=0,
        grid=grid,
        in_specs=[
            pl.BlockSpec((1, ts, H), lambda b, si, vi: (b, si, 0)),   # hidden
            pl.BlockSpec((1, 1, H), lambda b, si, vi: (b, 0, 0)),     # proj commit
            pl.BlockSpec((1, ts, 1), lambda b, si, vi: (b, si, 0)),   # commit scale
            pl.BlockSpec((1, ts, 1), lambda b, si, vi: (b, si, 0)),   # shifted labels
            pl.BlockSpec((H, tn), lambda b, si, vi: (0, vi)),         # lm_head weight
        ],
        out_specs=[
            pl.BlockSpec((1, ts, tn), lambda b, si, vi: (b, si, vi)),
            pl.BlockSpec((1, ts, 1), lambda b, si, vi: (b, si, 0)),
        ],
        scratch_shapes=[
            pltpu.VMEM((ts, H), wlm.dtype),        # cached modified hidden (bf16)
            pltpu.VMEM((ts, 1), jnp.float32),      # running max
            pltpu.VMEM((ts, 1), jnp.float32),      # running sum-exp
            pltpu.VMEM((ts, 1), jnp.float32),      # label logit accumulator
        ],
    )
    return pl.pallas_call(
        functools.partial(lmhead_ce_kernel, tn=tn, v_actual=int(v_actual)),
        out_shape=out_shape,
        grid_spec=grid_spec,
        compiler_params=pltpu.CompilerParams(
            dimension_semantics=("parallel", "parallel", "arbitrary"),
            vmem_limit_bytes=_VMEM_LIMIT),
    )(hidden, proj, commit_scale, shift_labels, wlm)


# ---------------------------------------------------------------------------
# Full forward (glue in plain JAX + the two Pallas kernels).
# ---------------------------------------------------------------------------
def entangled_forward(params, input_ids, attention_mask, labels, eps,
                      commitment_lambda=1.0, *, row_tile=256, vocab_tile=512,
                      matmul_dtype=jnp.bfloat16):
    # --- synthetic base model (glue): embedding + tanh projection ---
    emb = params['embed'][input_ids]                                   # (B, S, H)
    last_hidden = jnp.tanh(emb @ params['w_base'] + params['b_base'])  # hidden_states[-1]
    B, S, H = last_hidden.shape
    V = params['wlm_t'].shape[1]

    # sequence_lengths = attention_mask.sum(dim=1) - 1 ; clamped gather
    seq_lengths = jnp.sum(attention_mask, axis=1).astype(jnp.int32) - 1
    gather_idx = jnp.clip(seq_lengths, 0, S - 1)
    decisive_h = last_hidden[jnp.arange(B), gather_idx]                # (B, H)

    # --- Kernel A: variational head + reparam + Wc projection + KL ---
    b_pad = _round_up(max(B, 8), 8)                                    # sublane pad
    dh = jnp.pad(decisive_h, ((0, b_pad - B), (0, 0)))
    eps_p = jnp.pad(eps, ((0, b_pad - B), (0, 0)))
    mu_p, logvar_p, z_p, proj_p, kl = run_varhead(
        dh, params['w1'], params['b1'], params['w_mu'], params['b_mu'],
        params['w_lv'], params['b_lv'], params['wc_t'], eps_p, b_real=B)
    mu, logvar, z_star = mu_p[:B], logvar_p[:B], z_p[:B]
    projected_commitment = proj_p[:B]
    kl_loss = kl[0, 0]

    # --- Kernel B: commitment update + lm_head + fused shifted CE ---
    ts = min(row_tile, _round_up(S, 8))
    tn = min(vocab_tile, _round_up(V, 128))
    S_pad = _round_up(S, ts)
    V_pad = _round_up(V, tn)

    hidden_p = jnp.pad(last_hidden, ((0, 0), (0, S_pad - S), (0, 0)))

    # per-row commitment scale: lambda * (pos > seq_len)
    pos = jnp.arange(S, dtype=jnp.int32)[None, :]
    commit_scale = (float(commitment_lambda)
                    * (pos > seq_lengths[:, None]).astype(jnp.float32))
    commit_scale = jnp.pad(commit_scale, ((0, 0), (0, S_pad - S)))[..., None]

    # shifted labels: row s uses labels[:, s+1]; last position / padding -> -1
    # (any negative label is ignored, matching CrossEntropyLoss ignore semantics)
    shift_labels = jnp.concatenate(
        [labels[:, 1:].astype(jnp.int32), jnp.full((B, 1), -1, jnp.int32)], axis=1)
    shift_labels = jnp.pad(shift_labels, ((0, 0), (0, S_pad - S)),
                           constant_values=-1)[..., None]

    # bf16 MXU path (f32 accumulation); pad vocab to a lane-dense tile multiple
    wlm = params['wlm_t'].astype(matmul_dtype)
    if V_pad != V:
        wlm = jnp.pad(wlm, ((0, 0), (0, V_pad - V)))

    logits_p, nll_p = run_lmhead_ce(
        hidden_p, projected_commitment[:, None, :], commit_scale, shift_labels,
        wlm, ts=ts, tn=tn, v_actual=V)

    final_logits = logits_p[:, :S, :V]
    valid = (shift_labels[..., 0] >= 0).astype(jnp.float32)
    loss = jnp.sum(nll_p) / jnp.maximum(jnp.sum(valid), 1.0)

    return {
        'loss': loss,
        'logits': final_logits,
        'z_star': z_star,
        'mu': mu,
        'logvar': logvar,
        'kl_loss': kl_loss,
    }


# ---------------------------------------------------------------------------
# Deterministic parameter initialization + example run.
# ---------------------------------------------------------------------------
def init_params(key, vocab, hidden, commitment_dim):
    h2 = hidden // 2
    C = commitment_dim
    ks = jax.random.split(key, 8)
    s = 0.02
    # variational_head second Linear(H//2, 2C) is stored pre-split into its
    # [mu | logvar] column halves (ordering preserved from the torch layout).
    w2 = s * jax.random.normal(ks[4], (h2, 2 * C), jnp.float32)
    return {
        # synthetic base model
        'embed':  s * jax.random.normal(ks[0], (vocab, hidden), jnp.float32),
        'w_base': s * jax.random.normal(ks[1], (hidden, hidden), jnp.float32),
        'b_base': jnp.zeros((hidden,), jnp.float32),
        'wlm_t':  s * jax.random.normal(ks[2], (hidden, vocab), jnp.float32),  # [H, V]
        # variational_head: Linear(H, H//2) -> ReLU -> Linear(H//2, 2C)
        'w1': s * jax.random.normal(ks[3], (hidden, h2), jnp.float32),
        'b1': jnp.zeros((1, h2), jnp.float32),
        'w_mu': w2[:, :C], 'b_mu': jnp.zeros((1, C), jnp.float32),
        'w_lv': w2[:, C:], 'b_lv': jnp.zeros((1, C), jnp.float32),
        # Wc_projection: Linear(C, H, bias=False) -> stored as [C, H]
        'wc_t': s * jax.random.normal(ks[5], (commitment_dim, hidden), jnp.float32),
    }


if __name__ == "__main__":
    B, S, H, C, V = 2, 8, 32, 16, 128

    key = jax.random.PRNGKey(0)
    k_param, k_ids, k_eps = jax.random.split(key, 3)

    params = init_params(k_param, V, H, C)

    input_ids = jax.random.randint(k_ids, (B, S), 1, V, dtype=jnp.int32)
    attention_mask = jnp.array([[1, 1, 1, 1, 1, 1, 0, 0],
                                [1, 1, 1, 1, 1, 1, 1, 1]], jnp.int32)
    labels = input_ids
    # torch.randn_like(std) -> pre-drawn deterministic gaussian noise
    eps = jax.random.normal(k_eps, (B, C), jnp.float32)

    out = entangled_forward(params, input_ids, attention_mask, labels, eps,
                            commitment_lambda=1.0)
    jax.block_until_ready(out)

    assert out['logits'].shape == (B, S, V)
    assert out['mu'].shape == (B, C) and out['logvar'].shape == (B, C)
    assert out['z_star'].shape == (B, C)
    assert jnp.isfinite(out['loss']) and jnp.isfinite(out['kl_loss'])
    print("KERNEL_OK")
</pallas_src>

<mosaic_0001>
module attributes {stable_mosaic.version = 11 : i64} {
  func.func @varhead_kernel(%arg0: memref<8x32xf32, #tpu.memory_space<vmem>>, %arg1: memref<32x16xf32, #tpu.memory_space<vmem>>, %arg2: memref<1x16xf32, #tpu.memory_space<vmem>>, %arg3: memref<16x16xf32, #tpu.memory_space<vmem>>, %arg4: memref<1x16xf32, #tpu.memory_space<vmem>>, %arg5: memref<16x16xf32, #tpu.memory_space<vmem>>, %arg6: memref<1x16xf32, #tpu.memory_space<vmem>>, %arg7: memref<16x32xf32, #tpu.memory_space<vmem>>, %arg8: memref<8x16xf32, #tpu.memory_space<vmem>>, %arg9: memref<8x16xf32, #tpu.memory_space<vmem>>, %arg10: memref<8x16xf32, #tpu.memory_space<vmem>>, %arg11: memref<8x16xf32, #tpu.memory_space<vmem>>, %arg12: memref<8x32xf32, #tpu.memory_space<vmem>>, %arg13: memref<1x1xf32, #tpu.memory_space<smem>>) attributes {dimension_semantics = [], scalar_prefetch = 0 : i64, scratch_operands = 0 : i64, tpu.core_type = #tpu.core_type<tc>} {
    %c0 = arith.constant 0 : index
    %c0_0 = arith.constant 0 : index
    %0 = vector.load %arg0[%c0, %c0_0] : memref<8x32xf32, #tpu.memory_space<vmem>>, vector<8x32xf32>
    %c0_1 = arith.constant 0 : index
    %c0_2 = arith.constant 0 : index
    %1 = vector.load %arg1[%c0_1, %c0_2] : memref<32x16xf32, #tpu.memory_space<vmem>>, vector<32x16xf32>
    %cst = arith.constant dense<0.000000e+00> : vector<8x16xf32>
    %2 = tpu.matmul %0, %1, %cst {dimension_numbers = #tpu.dot_dimension_numbers<[1], [0], [0], [1], [0, 0, 1, 1], [], []>} : vector<8x32xf32>, vector<32x16xf32>, vector<8x16xf32> -> vector<8x16xf32>
    %c0_3 = arith.constant 0 : index
    %c0_4 = arith.constant 0 : index
    %3 = vector.load %arg2[%c0_3, %c0_4] : memref<1x16xf32, #tpu.memory_space<vmem>>, vector<1x16xf32>
    %4 = vector.broadcast %3 : vector<1x16xf32> to vector<8x16xf32>
    %5 = arith.addf %2, %4 : vector<8x16xf32>
    %cst_5 = arith.constant 0.000000e+00 : f32
    %6 = vector.broadcast %cst_5 : f32 to vector<8x16xf32>
    %7 = arith.maximumf %5, %6 : vector<8x16xf32>
    %c0_6 = arith.constant 0 : index
    %c0_7 = arith.constant 0 : index
    %8 = vector.load %arg3[%c0_6, %c0_7] : memref<16x16xf32, #tpu.memory_space<vmem>>, vector<16x16xf32>
    %cst_8 = arith.constant dense<0.000000e+00> : vector<8x16xf32>
    %9 = tpu.matmul %7, %8, %cst_8 {dimension_numbers = #tpu.dot_dimension_numbers<[1], [0], [0], [1], [0, 0, 1, 1], [], []>} : vector<8x16xf32>, vector<16x16xf32>, vector<8x16xf32> -> vector<8x16xf32>
    %c0_9 = arith.constant 0 : index
    %c0_10 = arith.constant 0 : index
    %10 = vector.load %arg4[%c0_9, %c0_10] : memref<1x16xf32, #tpu.memory_space<vmem>>, vector<1x16xf32>
    %11 = vector.broadcast %10 : vector<1x16xf32> to vector<8x16xf32>
    %12 = arith.addf %9, %11 : vector<8x16xf32>
    %c0_11 = arith.constant 0 : index
    %c0_12 = arith.constant 0 : index
    %13 = vector.load %arg5[%c0_11, %c0_12] : memref<16x16xf32, #tpu.memory_space<vmem>>, vector<16x16xf32>
    %cst_13 = arith.constant dense<0.000000e+00> : vector<8x16xf32>
    %14 = tpu.matmul %7, %13, %cst_13 {dimension_numbers = #tpu.dot_dimension_numbers<[1], [0], [0], [1], [0, 0, 1, 1], [], []>} : vector<8x16xf32>, vector<16x16xf32>, vector<8x16xf32> -> vector<8x16xf32>
    %c0_14 = arith.constant 0 : index
    %c0_15 = arith.constant 0 : index
    %15 = vector.load %arg6[%c0_14, %c0_15] : memref<1x16xf32, #tpu.memory_space<vmem>>, vector<1x16xf32>
    %16 = vector.broadcast %15 : vector<1x16xf32> to vector<8x16xf32>
    %17 = arith.addf %14, %16 : vector<8x16xf32>
    %c0_16 = arith.constant 0 : index
    %c0_17 = arith.constant 0 : index
    %18 = vector.load %arg8[%c0_16, %c0_17] : memref<8x16xf32, #tpu.memory_space<vmem>>, vector<8x16xf32>
    %cst_18 = arith.constant 5.000000e-01 : f32
    %19 = vector.broadcast %cst_18 : f32 to vector<8x16xf32>
    %20 = arith.mulf %19, %17 : vector<8x16xf32>
    %21 = math.exp %20 : vector<8x16xf32>
    %22 = arith.mulf %18, %21 : vector<8x16xf32>
    %23 = arith.addf %12, %22 : vector<8x16xf32>
    %c0_19 = arith.constant 0 : index
    %c0_20 = arith.constant 0 : index
    %24 = vector.load %arg7[%c0_19, %c0_20] : memref<16x32xf32, #tpu.memory_space<vmem>>, vector<16x32xf32>
    %cst_21 = arith.constant dense<0.000000e+00> : vector<8x32xf32>
    %25 = tpu.matmul %23, %24, %cst_21 {dimension_numbers = #tpu.dot_dimension_numbers<[1], [0], [0], [1], [0, 0, 1, 1], [], []>} : vector<8x16xf32>, vector<16x32xf32>, vector<8x32xf32> -> vector<8x32xf32>
    %c0_22 = arith.constant 0 : index
    %c0_23 = arith.constant 0 : index
    %26 = vector.load %arg9[%c0_22, %c0_23] : memref<8x16xf32, #tpu.memory_space<vmem>>, vector<8x16xf32>
    tpu.vector_store %arg9[%c0_22, %c0_23], %12 {strides = array<i32>} : memref<8x16xf32, #tpu.memory_space<vmem>>, vector<8x16xf32>,
    %c0_24 = arith.constant 0 : index
    %c0_25 = arith.constant 0 : index
    %27 = vector.load %arg10[%c0_24, %c0_25] : memref<8x16xf32, #tpu.memory_space<vmem>>, vector<8x16xf32>
    tpu.vector_store %arg10[%c0_24, %c0_25], %17 {strides = array<i32>} : memref<8x16xf32, #tpu.memory_space<vmem>>, vector<8x16xf32>,
    %c0_26 = arith.constant 0 : index
    %c0_27 = arith.constant 0 : index
    %28 = vector.load %arg11[%c0_26, %c0_27] : memref<8x16xf32, #tpu.memory_space<vmem>>, vector<8x16xf32>
    tpu.vector_store %arg11[%c0_26, %c0_27], %23 {strides = array<i32>} : memref<8x16xf32, #tpu.memory_space<vmem>>, vector<8x16xf32>,
    %c0_28 = arith.constant 0 : index
    %c0_29 = arith.constant 0 : index
    %29 = vector.load %arg12[%c0_28, %c0_29] : memref<8x32xf32, #tpu.memory_space<vmem>>, vector<8x32xf32>
    tpu.vector_store %arg12[%c0_28, %c0_29], %25 {strides = array<i32>} : memref<8x32xf32, #tpu.memory_space<vmem>>, vector<8x32xf32>,
    %cst_30 = arith.constant 1.000000e+00 : f32
    %30 = vector.broadcast %cst_30 : f32 to vector<8x16xf32>
    %31 = arith.addf %30, %17 : vector<8x16xf32>
    %32 = arith.mulf %12, %12 : vector<8x16xf32>
    %33 = arith.subf %31, %32 : vector<8x16xf32>
    %34 = math.exp %17 : vector<8x16xf32>
    %35 = arith.subf %33, %34 : vector<8x16xf32>
    %cst_31 = arith.constant -5.000000e-01 : f32
    %36 = vector.broadcast %cst_31 : f32 to vector<8x16xf32>
    %37 = arith.mulf %36, %35 : vector<8x16xf32>
    %38 = tpu.iota {dimensions = array<i32: 0>} : vector<8x16xi32>
    %c2_i32 = arith.constant 2 : i32
    %39 = vector.broadcast %c2_i32 : i32 to vector<8x16xi32>
    %40 = arith.cmpi slt, %38, %39 : vector<8x16xi32>
    %cst_32 = arith.constant 0.000000e+00 : f32
    %41 = vector.broadcast %cst_32 : f32 to vector<8x16xf32>
    %42 = arith.select %40, %37, %41 : vector<8x16xi1>, vector<8x16xf32>
    %43 = vector.shape_cast %42 : vector<8x16xf32> to vector<1x8x16xf32>
    %cst_33 = arith.constant dense<0.000000e+00> : vector<1xf32>
    %44 = vector.multi_reduction <add>, %43, %cst_33 [1, 2] : vector<1x8x16xf32> to vector<1xf32>
    %45 = vector.shape_cast %44 : vector<1xf32> to vector<1x1x1xf32>
    %46 = vector.extract %45[0, 0, 0] : f32 from vector<1x1x1xf32>
    %cst_34 = arith.constant 2.000000e+00 : f32
    %47 = arith.divf %46, %cst_34 : f32
    %c0_35 = arith.constant 0 : index
    %c0_36 = arith.constant 0 : index
    %48 = memref.load %arg13[%c0_35, %c0_36] : memref<1x1xf32, #tpu.memory_space<smem>>
    memref.store %47, %arg13[%c0_35, %c0_36] : memref<1x1xf32, #tpu.memory_space<smem>>
    return
  }
}

</mosaic_0001>

<llo_original>
// kernel: tpu_custom_call.1
$region0: #{tpu_custom_call.1}
  #allocation0 [shape = 'u32[]', space=smem, size = 0x4, offset = 0x4, fixed_abs, tag = 'smem constant byte address 0x4 - core index']
  #allocation1 [shape = 'u32[144,128]{1,0:T(1,128)}', space=vmem, size = 0x12000, scoped, tag = 'internal scratch']
  %s0 = inlined_call_operand.hbm [shape: f32[8,32], index: 0, kind: input, shape index: {}]
  %s1 = inlined_call_operand.vmem [shape: f32[32,16], index: 1, kind: input, shape index: {}]
  %s2 = inlined_call_operand.vmem [shape: f32[1,16], index: 2, kind: input, shape index: {}]
  %s3 = inlined_call_operand.vmem [shape: f32[16,16], index: 3, kind: input, shape index: {}]
  %s4 = inlined_call_operand.hbm [shape: f32[1,16], index: 4, kind: input, shape index: {}]
  %s5 = inlined_call_operand.vmem [shape: f32[16,16], index: 5, kind: input, shape index: {}]
  %s6 = inlined_call_operand.vmem [shape: f32[1,16], index: 6, kind: input, shape index: {}]
  %s7 = inlined_call_operand.vmem [shape: f32[16,32], index: 7, kind: input, shape index: {}]
  %s8 = inlined_call_operand.vmem [shape: f32[8,16], index: 8, kind: input, shape index: {}]
  %s9 = inlined_call_operand.hbm [shape: f32[8,16], index: 9, kind: output, shape index: {0}]
  %s10 = inlined_call_operand.hbm [shape: f32[8,16], index: 10, kind: output, shape index: {1}]
  %s11 = inlined_call_operand.hbm [shape: f32[8,16], index: 11, kind: output, shape index: {2}]
  %s12 = inlined_call_operand.hbm [shape: f32[8,32], index: 12, kind: output, shape index: {3}]
  %s13 = inlined_call_operand.hbm [shape: f32[1,1], index: 13, kind: output, shape index: {4}]
  %14 = xla_tuple %s9, %s10, %s11, %s12, %s13
  %s15 = sld [smem:[#allocation0]]
  $region86: #{tpu_custom_call.1} parent=0
    _
  %s17 = ssub.s32 1, %s15
  %s18 = scalar_select 0, %s17, %s15
  $region1: #{tpu_custom_call.1} parent=0
    #allocation2 [shape = 'u8[4096]{0}', space=vmem, size = 0x1000, scoped, tag = 'input window, operand 0, single buffered']
    #allocation3 [shape = 's32[1]{0}', space=sflag, size = 0x4, scoped, tag = 'scoped memory for tpu_custom_call.1']
    #allocation4 [shape = 's32[1]{0}', space=sflag, size = 0x4, scoped, tag = 'scoped memory for tpu_custom_call.1']
    #allocation5 [shape = 's32[1]{0}', space=sflag, size = 0x4, scoped, tag = 'scoped memory for tpu_custom_call.1']
    #allocation6 [shape = 'u8[512]{0}', space=vmem, size = 0x400, scoped, tag = 'input window, operand 4, single buffered']
    #allocation7 [shape = 's32[1]{0}', space=sflag, size = 0x4, scoped, tag = 'scoped memory for tpu_custom_call.1']
    #allocation8 [shape = 'u8[4096]{0}', space=vmem, size = 0x1000, scoped, tag = 'output window, operand 0, single buffered']
    #allocation9 [shape = 'u8[4096]{0}', space=vmem, size = 0x1000, scoped, tag = 'output window, operand 1, single buffered']
    #allocation10 [shape = 's32[1]{0}', space=sflag, size = 0x4, scoped, tag = 'scoped memory for tpu_custom_call.1']
    #allocation11 [shape = 'u8[4096]{0}', space=vmem, size = 0x1000, scoped, tag = 'output window, operand 2, single buffered']
    #allocation12 [shape = 'u8[4096]{0}', space=vmem, size = 0x1000, scoped, tag = 'output window, operand 3, single buffered']
    #allocation13 [shape = 's32[1]{0}', space=sflag, size = 0x4, scoped, tag = 'scoped memory for tpu_custom_call.1']
    #allocation14 [shape = 'u8[512]{0}', space=smem, size = 0x200, scoped, tag = 'output window, operand 4, single buffered']
    %19 = vsyncpa [#allocation3], 0
    %20 = vsyncpa [#allocation7], 0
    %21 = vsyncpa [#allocation4], 0
    %22 = vsyncpa [#allocation10], 0
    %23 = vsyncpa [#allocation13], 0
    %24 = vsyncpa [#allocation5], 0
    // Predicated region
    $region2: #{tpu_custom_call.1} parent=1 // pred_check
      _
    $region3: #{tpu_custom_call.1} parent=1 // pred_check_branch
      %26 = sbr.rel (0) target = $region5
    $region4: #{tpu_custom_call.1} parent=1 // pred_region
      %s28 = ssub.s32 128, 128
      %29 = vsyncadd [#allocation3], %s28
      %s31 = sshll.u32 [#allocation2], 4
      %s32 = int_to_ptr.vmem [resolvable:$true] %s31
      %34 = dma.hbm_to_vmem [thread:$0]  %s0, 128, %s32, [#allocation3]
    $region5: #{tpu_custom_call.1} parent=1 // pred_fallthru
      _
    // Predicated region
    $region6: #{tpu_custom_call.1} parent=1 // pred_check
      _
    $region7: #{tpu_custom_call.1} parent=1 // pred_check_branch
      %36 = sbr.rel (0) target = $region9
    $region8: #{tpu_custom_call.1} parent=1 // pred_region
      _
    $region9: #{tpu_custom_call.1} parent=1 // pred_fallthru
      _
    // Predicated region
    $region10: #{tpu_custom_call.1} parent=1 // pred_check
      _
    $region11: #{tpu_custom_call.1} parent=1 // pred_check_branch
      %38 = sbr.rel (0) target = $region13
    $region12: #{tpu_custom_call.1} parent=1 // pred_region
      _
    $region13: #{tpu_custom_call.1} parent=1 // pred_fallthru
      _
    // Predicated region
    $region14: #{tpu_custom_call.1} parent=1 // pred_check
      _
    $region15: #{tpu_custom_call.1} parent=1 // pred_check_branch
      %40 = sbr.rel (0) target = $region17
    $region16: #{tpu_custom_call.1} parent=1 // pred_region
      _
    $region17: #{tpu_custom_call.1} parent=1 // pred_fallthru
      _
    // Predicated region
    $region18: #{tpu_custom_call.1} parent=1 // pred_check
      _
    $region19: #{tpu_custom_call.1} parent=1 // pred_check_branch
      %42 = sbr.rel (0) target = $region21
    $region20: #{tpu_custom_call.1} parent=1 // pred_region
      %s44 = ssub.s32 16, 16
      %45 = vsyncadd [#allocation7], %s44
      %s47 = sshll.u32 [#allocation6], 4
      %s48 = int_to_ptr.vmem [resolvable:$true] %s47
      %50 = dma.hbm_to_vmem [thread:$0]  %s4, 16, %s48, [#allocation7]
    $region21: #{tpu_custom_call.1} parent=1 // pred_fallthru
      _
    // Predicated region
    $region22: #{tpu_custom_call.1} parent=1 // pred_check
      _
    $region23: #{tpu_custom_call.1} parent=1 // pred_check_branch
      %52 = sbr.rel (0) target = $region25
    $region24: #{tpu_custom_call.1} parent=1 // pred_region
      _
    $region25: #{tpu_custom_call.1} parent=1 // pred_fallthru
      _
    // Predicated region
    $region26: #{tpu_custom_call.1} parent=1 // pred_check
      _
    $region27: #{tpu_custom_call.1} parent=1 // pred_check_branch
      %54 = sbr.rel (0) target = $region29
    $region28: #{tpu_custom_call.1} parent=1 // pred_region
      _
    $region29: #{tpu_custom_call.1} parent=1 // pred_fallthru
      _
    // Predicated region
    $region30: #{tpu_custom_call.1} parent=1 // pred_check
      _
    $region31: #{tpu_custom_call.1} parent=1 // pred_check_branch
      %56 = sbr.rel (0) target = $region33
    $region32: #{tpu_custom_call.1} parent=1 // pred_region
      _
    $region33: #{tpu_custom_call.1} parent=1 // pred_fallthru
      _
    // Predicated region
    $region34: #{tpu_custom_call.1} parent=1 // pred_check
      _
    $region35: #{tpu_custom_call.1} parent=1 // pred_check_branch
      %58 = sbr.rel (0) target = $region37
    $region36: #{tpu_custom_call.1} parent=1 // pred_region
      _
    $region37: #{tpu_custom_call.1} parent=1 // pred_fallthru
      _
    // Predicated region
    $region38: #{tpu_custom_call.1} parent=1 // pred_check
      _
    $region39: #{tpu_custom_call.1} parent=1 // pred_check_branch
      %60 = sbr.rel (0) target = $region41
    $region40: #{tpu_custom_call.1} parent=1 // pred_region
      %61 = dma.done [#allocation3], 128
    $region41: #{tpu_custom_call.1} parent=1 // pred_fallthru
      _
    // Predicated region
    $region42: #{tpu_custom_call.1} parent=1 // pred_check
      _
    $region43: #{tpu_custom_call.1} parent=1 // pred_check_branch
      %63 = sbr.rel (0) target = $region45
    $region44: #{tpu_custom_call.1} parent=1 // pred_region
      %64 = dma.done [#allocation7], 16
    $region45: #{tpu_custom_call.1} parent=1 // pred_fallthru
      _
    %v65 = vld [vmem:[#allocation2] sm:$0xff]
    %v66 = vld [vmem:[%s1] sm:$0xff]
    %v67 = vld [vmem:[%s1 + $0x8] sm:$0xff]
    %v68 = vld [vmem:[%s1 + $0x10] sm:$0xff]
    %v69 = vld [vmem:[%s1 + $0x18] sm:$0xff]
    %v70 = vld [vmem:[%s2] sm:$0x1]
    %v72 = vlaneseq
    %v73 = vshrl.u32 %v72, 7
    %v74 = vsub.s32 0, %v73
    %v75 = vrot.slane %v70, %v74
    %vm77 = vcmask 261120
    %v79 = vsel %vm77, %v65, 0
    %81 = vmatprep.subr.mxu0 0.0
    %82 = vmatpush1.msra.mxu0 0.0
    %83 = vmatprep.subr.mxu0 0.0
    %84 = vmatpush1.msra.mxu0 0.0
    %85 = vmatprep.subr.mxu0 0.0
    %86 = vmatpush1.msra.mxu0 0.0
    %87 = vmatprep.subr.mxu0 0.0
    %88 = vmatpush1.msra.mxu0 0.0
    %89 = vmatprep.subr.mxu0 0.0
    %90 = vmatpush1.msra.mxu0 0.0
    %91 = vmatprep.subr.mxu0 0.0
    %92 = vmatpush1.msra.mxu0 0.0
    %93 = vmatprep.subr.mxu0 0.0
    %94 = vmatpush1.msra.mxu0 0.0
    %95 = vmatprep.subr.mxu0 0.0
    %96 = vmatpush1.msra.mxu0 0.0
    %97 = vmatprep.subr.mxu0 0.0
    %98 = vmatpush1.msra.mxu0 0.0
    %99 = vmatprep.subr.mxu0 0.0
    %100 = vmatpush1.msra.mxu0 0.0
    %101 = vmatprep.subr.mxu0 0.0
    %102 = vmatpush1.msra.mxu0 0.0
    %103 = vmatprep.subr.mxu0 0.0
    %104 = vmatpush1.msra.mxu0 0.0
    %105 = vmatprep.subr.mxu0 0.0
    %106 = vmatpush1.msra.mxu0 %v69
    %107 = vmatprep.subr.mxu0 0.0
    %108 = vmatpush1.msra.mxu0 %v68
    %109 = vmatprep.subr.mxu0 0.0
    %110 = vmatpush1.msra.mxu0 %v67
    %111 = vmatprep.subr.mxu0 0.0
    %112 = vmatpush1.msra.mxu0 %v66
    %113 = vmatprep.subr.mxu0 0.0
    %114 = vmatpush2.msra.mxu0 0.0
    %115 = vmatprep.subr.mxu0 0.0
    %116 = vmatpush2.msra.mxu0 0.0
    %117 = vmatprep.subr.mxu0 0.0
    %118 = vmatpush2.msra.mxu0 0.0
    %119 = vmatprep.subr.mxu0 0.0
    %120 = vmatpush2.msra.mxu0 0.0
    %121 = vmatprep.subr.mxu0 0.0
    %122 = vmatpush2.msra.mxu0 0.0
    %123 = vmatprep.subr.mxu0 0.0
    %124 = vmatpush2.msra.mxu0 0.0
    %125 = vmatprep.subr.mxu0 0.0
    %126 = vmatpush2.msra.mxu0 0.0
    %127 = vmatprep.subr.mxu0 0.0
    %128 = vmatpush2.msra.mxu0 0.0
    %129 = vmatprep.subr.mxu0 0.0
    %130 = vmatpush2.msra.mxu0 0.0
    %131 = vmatprep.subr.mxu0 0.0
    %132 = vmatpush2.msra.mxu0 0.0
    %133 = vmatprep.subr.mxu0 0.0
    %134 = vmatpush2.msra.mxu0 0.0
    %135 = vmatprep.subr.mxu0 0.0
    %136 = vmatpush2.msra.mxu0 0.0
    %137 = vmatprep.subr.mxu0 0.0
    %138 = vmatpush2.msra.mxu0 0.0
    %139 = vmatprep.subr.mxu0 0.0
    %140 = vmatpush2.msra.mxu0 0.0
    %141 = vmatprep.subr.mxu0 0.0
    %142 = vmatpush2.msra.mxu0 0.0
    %143 = vmatprep.subr.mxu0 0.0
    %144 = vmatpush2.msra.mxu0 0.0
    %145 = vmatprep.mubr.f32.mxu0 0.0
    %146 = vmatmul.mubr.f32.gmra.mxu0 %v79
    %v147 = vpop.f32.mrf.mxu0
    %v148 = vadd.f32 %v75, %v147
    %v149 = vpop.f32.mrf.mxu0
    %150 = vdwg.mxu0
    %v151 = vmax.f32 %v148, 0.0
    %v152 = vld [vmem:[%s3] sm:$0xff]
    %v153 = vld [vmem:[%s3 + $0x8] sm:$0xff]
    %v154 = vld [vmem:[#allocation6] sm:$0x1]
    %v156 = vlaneseq
    %v157 = vshrl.u32 %v156, 7
    %v158 = vsub.s32 0, %v157
    %v159 = vrot.slane %v154, %v158
    %vm161 = vcmask 130048
    %v163 = vsel %vm161, %v151, 0
    %165 = vmatprep.subr.mxu0 0.0
    %166 = vmatpush1.msra.mxu0 0.0
    %167 = vmatprep.subr.mxu0 0.0
    %168 = vmatpush1.msra.mxu0 0.0
    %169 = vmatprep.subr.mxu0 0.0
    %170 = vmatpush1.msra.mxu0 0.0
    %171 = vmatprep.subr.mxu0 0.0
    %172 = vmatpush1.msra.mxu0 0.0
    %173 = vmatprep.subr.mxu0 0.0
    %174 = vmatpush1.msra.mxu0 0.0
    %175 = vmatprep.subr.mxu0 0.0
    %176 = vmatpush1.msra.mxu0 0.0
    %177 = vmatprep.subr.mxu0 0.0
    %178 = vmatpush1.msra.mxu0 0.0
    %179 = vmatprep.subr.mxu0 0.0
    %180 = vmatpush1.msra.mxu0 0.0
    %181 = vmatprep.subr.mxu0 0.0
    %182 = vmatpush1.msra.mxu0 0.0
    %183 = vmatprep.subr.mxu0 0.0
    %184 = vmatpush1.msra.mxu0 0.0
    %185 = vmatprep.subr.mxu0 0.0
    %186 = vmatpush1.msra.mxu0 0.0
    %187 = vmatprep.subr.mxu0 0.0
    %188 = vmatpush1.msra.mxu0 0.0
    %189 = vmatprep.subr.mxu0 0.0
    %190 = vmatpush1.msra.mxu0 0.0
    %191 = vmatprep.subr.mxu0 0.0
    %192 = vmatpush1.msra.mxu0 0.0
    %193 = vmatprep.subr.mxu0 0.0
    %194 = vmatpush1.msra.mxu0 %v153
    %195 = vmatprep.subr.mxu0 0.0
    %196 = vmatpush1.msra.mxu0 %v152
    %197 = vmatprep.subr.mxu0 0.0
    %198 = vmatpush2.msra.mxu0 0.0
    %199 = vmatprep.subr.mxu0 0.0
    %200 = vmatpush2.msra.mxu0 0.0
    %201 = vmatprep.subr.mxu0 0.0
    %202 = vmatpush2.msra.mxu0 0.0
    %203 = vmatprep.subr.mxu0 0.0
    %204 = vmatpush2.msra.mxu0 0.0
    %205 = vmatprep.subr.mxu0 0.0
    %206 = vmatpush2.msra.mxu0 0.0
    %207 = vmatprep.subr.mxu0 0.0
    %208 = vmatpush2.msra.mxu0 0.0
    %209 = vmatprep.subr.mxu0 0.0
    %210 = vmatpush2.msra.mxu0 0.0
    %211 = vmatprep.subr.mxu0 0.0
    %212 = vmatpush2.msra.mxu0 0.0
    %213 = vmatprep.subr.mxu0 0.0
    %214 = vmatpush2.msra.mxu0 0.0
    %215 = vmatprep.subr.mxu0 0.0
    %216 = vmatpush2.msra.mxu0 0.0
    %217 = vmatprep.subr.mxu0 0.0
    %218 = vmatpush2.msra.mxu0 0.0
    %219 = vmatprep.subr.mxu0 0.0
    %220 = vmatpush2.msra.mxu0 0.0
    %221 = vmatprep.subr.mxu0 0.0
    %222 = vmatpush2.msra.mxu0 0.0
    %223 = vmatprep.subr.mxu0 0.0
    %224 = vmatpush2.msra.mxu0 0.0
    %225 = vmatprep.subr.mxu0 0.0
    %226 = vmatpush2.msra.mxu0 0.0
    %227 = vmatprep.subr.mxu0 0.0
    %228 = vmatpush2.msra.mxu0 0.0
    %229 = vmatprep.mubr.f32.mxu0 0.0
    %230 = vmatmul.mubr.f32.gmra.mxu0 %v163
    %v231 = vpop.f32.mrf.mxu0
    %v232 = vadd.f32 %v159, %v231
    %v233 = vpop.f32.mrf.mxu0
    %234 = vdwg.mxu0
    %v235 = vld [vmem:[%s5] sm:$0xff]
    %v236 = vld [vmem:[%s5 + $0x8] sm:$0xff]
    %v237 = vld [vmem:[%s6] sm:$0x1]
    %v239 = vlaneseq
    %v240 = vshrl.u32 %v239, 7
    %v241 = vsub.s32 0, %v240
    %v242 = vrot.slane %v237, %v241
    %244 = vmatprep.subr.mxu0 0.0
    %245 = vmatpush1.msra.mxu0 0.0
    %246 = vmatprep.subr.mxu0 0.0
    %247 = vmatpush1.msra.mxu0 0.0
    %248 = vmatprep.subr.mxu0 0.0
    %249 = vmatpush1.msra.mxu0 0.0
    %250 = vmatprep.subr.mxu0 0.0
    %251 = vmatpush1.msra.mxu0 0.0
    %252 = vmatprep.subr.mxu0 0.0
    %253 = vmatpush1.msra.mxu0 0.0
    %254 = vmatprep.subr.mxu0 0.0
    %255 = vmatpush1.msra.mxu0 0.0
    %256 = vmatprep.subr.mxu0 0.0
    %257 = vmatpush1.msra.mxu0 0.0
    %258 = vmatprep.subr.mxu0 0.0
    %259 = vmatpush1.msra.mxu0 0.0
    %260 = vmatprep.subr.mxu0 0.0
    %261 = vmatpush1.msra.mxu0 0.0
    %262 = vmatprep.subr.mxu0 0.0
    %263 = vmatpush1.msra.mxu0 0.0
    %264 = vmatprep.subr.mxu0 0.0
    %265 = vmatpush1.msra.mxu0 0.0
    %266 = vmatprep.subr.mxu0 0.0
    %267 = vmatpush1.msra.mxu0 0.0
    %268 = vmatprep.subr.mxu0 0.0
    %269 = vmatpush1.msra.mxu0 0.0
    %270 = vmatprep.subr.mxu0 0.0
    %271 = vmatpush1.msra.mxu0 0.0
    %272 = vmatprep.subr.mxu0 0.0
    %273 = vmatpush1.msra.mxu0 %v236
    %274 = vmatprep.subr.mxu0 0.0
    %275 = vmatpush1.msra.mxu0 %v235
    %276 = vmatprep.subr.mxu0 0.0
    %277 = vmatpush2.msra.mxu0 0.0
    %278 = vmatprep.subr.mxu0 0.0
    %279 = vmatpush2.msra.mxu0 0.0
    %280 = vmatprep.subr.mxu0 0.0
    %281 = vmatpush2.msra.mxu0 0.0
    %282 = vmatprep.subr.mxu0 0.0
    %283 = vmatpush2.msra.mxu0 0.0
    %284 = vmatprep.subr.mxu0 0.0
    %285 = vmatpush2.msra.mxu0 0.0
    %286 = vmatprep.subr.mxu0 0.0
    %287 = vmatpush2.msra.mxu0 0.0
    %288 = vmatprep.subr.mxu0 0.0
    %289 = vmatpush2.msra.mxu0 0.0
    %290 = vmatprep.subr.mxu0 0.0
    %291 = vmatpush2.msra.mxu0 0.0
    %292 = vmatprep.subr.mxu0 0.0
    %293 = vmatpush2.msra.mxu0 0.0
    %294 = vmatprep.subr.mxu0 0.0
    %295 = vmatpush2.msra.mxu0 0.0
    %296 = vmatprep.subr.mxu0 0.0
    %297 = vmatpush2.msra.mxu0 0.0
    %298 = vmatprep.subr.mxu0 0.0
    %299 = vmatpush2.msra.mxu0 0.0
    %300 = vmatprep.subr.mxu0 0.0
    %301 = vmatpush2.msra.mxu0 0.0
    %302 = vmatprep.subr.mxu0 0.0
    %303 = vmatpush2.msra.mxu0 0.0
    %304 = vmatprep.subr.mxu0 0.0
    %305 = vmatpush2.msra.mxu0 0.0
    %306 = vmatprep.subr.mxu0 0.0
    %307 = vmatpush2.msra.mxu0 0.0
    %308 = vmatprep.mubr.f32.mxu0 0.0
    %309 = vmatmul.mubr.f32.gmra.mxu0 %v163
    %v310 = vpop.f32.mrf.mxu0
    %v311 = vadd.f32 %v242, %v310
    %v312 = vpop.f32.mrf.mxu0
    %313 = vdwg.mxu0
    %v314 = vld [vmem:[%s8] sm:$0xff]
    %v315 = vmul.f32 %v311, 0.5
    %v316 = vmul.f32 %v315, 1.442695
    %v317 = vpow.pop %v316
    %v318 = vmul.f32 %v314, %v317
    %v319 = vadd.f32 %v232, %v318
    %v320 = vld [vmem:[%s7] sm:$0xff]
    %v321 = vld [vmem:[%s7 + $0x8] sm:$0xff]
    %v323 = vsel %vm161, %v319, 0
    %325 = vmatprep.subr.mxu0 0.0
    %326 = vmatpush1.msra.mxu0 0.0
    %327 = vmatprep.subr.mxu0 0.0
    %328 = vmatpush1.msra.mxu0 0.0
    %329 = vmatprep.subr.mxu0 0.0
    %330 = vmatpush1.msra.mxu0 0.0
    %331 = vmatprep.subr.mxu0 0.0
    %332 = vmatpush1.msra.mxu0 0.0
    %333 = vmatprep.subr.mxu0 0.0
    %334 = vmatpush1.msra.mxu0 0.0
    %335 = vmatprep.subr.mxu0 0.0
    %336 = vmatpush1.msra.mxu0 0.0
    %337 = vmatprep.subr.mxu0 0.0
    %338 = vmatpush1.msra.mxu0 0.0
    %339 = vmatprep.subr.mxu0 0.0
    %340 = vmatpush1.msra.mxu0 0.0
    %341 = vmatprep.subr.mxu0 0.0
    %342 = vmatpush1.msra.mxu0 0.0
    %343 = vmatprep.subr.mxu0 0.0
    %344 = vmatpush1.msra.mxu0 0.0
    %345 = vmatprep.subr.mxu0 0.0
    %346 = vmatpush1.msra.mxu0 0.0
    %347 = vmatprep.subr.mxu0 0.0
    %348 = vmatpush1.msra.mxu0 0.0
    %349 = vmatprep.subr.mxu0 0.0
    %350 = vmatpush1.msra.mxu0 0.0
    %351 = vmatprep.subr.mxu0 0.0
    %352 = vmatpush1.msra.mxu0 0.0
    %353 = vmatprep.subr.mxu0 0.0
    %354 = vmatpush1.msra.mxu0 %v321
    %355 = vmatprep.subr.mxu0 0.0
    %356 = vmatpush1.msra.mxu0 %v320
    %357 = vmatprep.subr.mxu0 0.0
    %358 = vmatpush2.msra.mxu0 0.0
    %359 = vmatprep.subr.mxu0 0.0
    %360 = vmatpush2.msra.mxu0 0.0
    %361 = vmatprep.subr.mxu0 0.0
    %362 = vmatpush2.msra.mxu0 0.0
    %363 = vmatprep.subr.mxu0 0.0
    %364 = vmatpush2.msra.mxu0 0.0
    %365 = vmatprep.subr.mxu0 0.0
    %366 = vmatpush2.msra.mxu0 0.0
    %367 = vmatprep.subr.mxu0 0.0
    %368 = vmatpush2.msra.mxu0 0.0
    %369 = vmatprep.subr.mxu0 0.0
    %370 = vmatpush2.msra.mxu0 0.0
    %371 = vmatprep.subr.mxu0 0.0
    %372 = vmatpush2.msra.mxu0 0.0
    %373 = vmatprep.subr.mxu0 0.0
    %374 = vmatpush2.msra.mxu0 0.0
    %375 = vmatprep.subr.mxu0 0.0
    %376 = vmatpush2.msra.mxu0 0.0
    %377 = vmatprep.subr.mxu0 0.0
    %378 = vmatpush2.msra.mxu0 0.0
    %379 = vmatprep.subr.mxu0 0.0
    %380 = vmatpush2.msra.mxu0 0.0
    %381 = vmatprep.subr.mxu0 0.0
    %382 = vmatpush2.msra.mxu0 0.0
    %383 = vmatprep.subr.mxu0 0.0
    %384 = vmatpush2.msra.mxu0 0.0
    %385 = vmatprep.subr.mxu0 0.0
    %386 = vmatpush2.msra.mxu0 0.0
    %387 = vmatprep.subr.mxu0 0.0
    %388 = vmatpush2.msra.mxu0 0.0
    %389 = vmatprep.mubr.f32.mxu0 0.0
    %390 = vmatmul.mubr.f32.gmra.mxu0 %v323
    %v391 = vpop.f32.mrf.mxu0
    %v392 = vadd.f32 0.0, %v391
    %v393 = vpop.f32.mrf.mxu0
    %394 = vdwg.mxu0
    %395 = vst.msk [vmem:[#allocation8] sm:$0xff] %vm161, %v232
    %396 = vst.msk [vmem:[#allocation9] sm:$0xff] %vm161, %v311
    %397 = vst.msk [vmem:[#allocation11] sm:$0xff] %vm161, %v319
    %398 = vst.msk [vmem:[#allocation12] sm:$0xff] %vm77, %v392
    %v399 = vadd.f32 %v311, 1.0
    %v400 = vmul.f32 %v232, %v232
    %v401 = vsub.f32 %v399, %v400
    %v402 = vmul.f32 %v311, 1.442695
    %v403 = vpow.pop %v402
    %v404 = vsub.f32 %v401, %v403
    %v405 = vmul.f32 %v404, -0.5
    %v406 = vlaneseq
    %v407 = vshrl.u32 %v406, 7
    %vm408 = vcmp.lt.s32.totalorder %v407, 2
    %v409 = vsel %vm408, %v405, 0.0
    %v410 = vsel %vm161, %v409, 0.0
    %411 = vadd.xlane.f32.xlu0 %v410
    %v412 = vpop.xlane.xlu0 %411
    %v413 = vrot.slane %v412, 4
    %v414 = vadd.f32 %v412, %v413
    %v415 = vrot.slane %v414, 2
    %v416 = vadd.f32 %v414, %v415
    %v417 = vrot.slane %v416, 1
    %v418 = vadd.f32 %v416, %v417
    %s419 = vtos %v418
    %v420 = vrcp.pop 2.0
    %s421 = vtos %v420
    %s422 = smul.f32 %s419, %s421
    %s423 = scalar_lea.smem [#allocation14], 0
    %424 = sst [smem:[%s423]] %s422
    // Predicated region
    $region46: #{tpu_custom_call.1} parent=1 // pred_check
      _
    $region47: #{tpu_custom_call.1} parent=1 // pred_check_branch
      %426 = sbr.rel (0) target = $region49
    $region48: #{tpu_custom_call.1} parent=1 // pred_region
      %s428 = ssub.s32 128, 128
      %429 = vsyncadd [#allocation4], %s428
      %s431 = sshll.u32 [#allocation8], 4
      %s432 = int_to_ptr.vmem [resolvable:$true] %s431
      %434 = dma.vmem_to_hbm [thread:$0]  %s432, 128, %s9, [#allocation4]
    $region49: #{tpu_custom_call.1} parent=1 // pred_fallthru
      _
    // Predicated region
    $region50: #{tpu_custom_call.1} parent=1 // pred_check
      _
    $region51: #{tpu_custom_call.1} parent=1 // pred_check_branch
      %436 = sbr.rel (0) target = $region53
    $region52: #{tpu_custom_call.1} parent=1 // pred_region
      %s438 = ssub.s32 128, 128
      %439 = vsyncadd [#allocation10], %s438
      %s441 = sshll.u32 [#allocation9], 4
      %s442 = int_to_ptr.vmem [resolvable:$true] %s441
      %444 = dma.vmem_to_hbm [thread:$0]  %s442, 128, %s10, [#allocation10]
    $region53: #{tpu_custom_call.1} parent=1 // pred_fallthru
      _
    // Predicated region
    $region54: #{tpu_custom_call.1} parent=1 // pred_check
      _
    $region55: #{tpu_custom_call.1} parent=1 // pred_check_branch
      %446 = sbr.rel (0) target = $region57
    $region56: #{tpu_custom_call.1} parent=1 // pred_region
      %s448 = ssub.s32 128, 128
      %449 = vsyncadd [#allocation10], %s448
      %s451 = sshll.u32 [#allocation11], 4
      %s452 = int_to_ptr.vmem [resolvable:$true] %s451
      %454 = dma.vmem_to_hbm [thread:$0]  %s452, 128, %s11, [#allocation10]
    $region57: #{tpu_custom_call.1} parent=1 // pred_fallthru
      _
    // Predicated region
    $region58: #{tpu_custom_call.1} parent=1 // pred_check
      _
    $region59: #{tpu_custom_call.1} parent=1 // pred_check_branch
      %456 = sbr.rel (0) target = $region61
    $region60: #{tpu_custom_call.1} parent=1 // pred_region
      %s458 = ssub.s32 128, 128
      %459 = vsyncadd [#allocation13], %s458
      %s461 = sshll.u32 [#allocation12], 4
      %s462 = int_to_ptr.vmem [resolvable:$true] %s461
      %464 = dma.vmem_to_hbm [thread:$0]  %s462, 128, %s12, [#allocation13]
    $region61: #{tpu_custom_call.1} parent=1 // pred_fallthru
      _
    // Predicated region
    $region62: #{tpu_custom_call.1} parent=1 // pred_check
      _
    $region63: #{tpu_custom_call.1} parent=1 // pred_check_branch
      %466 = sbr.rel (0) target = $region65
    $region64: #{tpu_custom_call.1} parent=1 // pred_region
      %s468 = ssub.s32 16, 16
      %469 = vsyncadd [#allocation5], %s468
      %472 = dma.smem_to_hbm [#allocation14], 16, %s13, [#allocation5]
    $region65: #{tpu_custom_call.1} parent=1 // pred_fallthru
      _
    // Predicated region
    $region66: #{tpu_custom_call.1} parent=1 // pred_check
      _
    $region67: #{tpu_custom_call.1} parent=1 // pred_check_branch
      %474 = sbr.rel (0) target = $region69
    $region68: #{tpu_custom_call.1} parent=1 // pred_region
      %475 = dma.done [#allocation4], 128
    $region69: #{tpu_custom_call.1} parent=1 // pred_fallthru
      _
    // Predicated region
    $region70: #{tpu_custom_call.1} parent=1 // pred_check
      _
    $region71: #{tpu_custom_call.1} parent=1 // pred_check_branch
      %477 = sbr.rel (0) target = $region73
    $region72: #{tpu_custom_call.1} parent=1 // pred_region
      %478 = dma.done [#allocation10], 128
    $region73: #{tpu_custom_call.1} parent=1 // pred_fallthru
      _
    // Predicated region
    $region74: #{tpu_custom_call.1} parent=1 // pred_check
      _
    $region75: #{tpu_custom_call.1} parent=1 // pred_check_branch
      %480 = sbr.rel (0) target = $region77
    $region76: #{tpu_custom_call.1} parent=1 // pred_region
      %481 = dma.done [#allocation10], 128
    $region77: #{tpu_custom_call.1} parent=1 // pred_fallthru
      _
    // Predicated region
    $region78: #{tpu_custom_call.1} parent=1 // pred_check
      _
    $region79: #{tpu_custom_call.1} parent=1 // pred_check_branch
      %483 = sbr.rel (0) target = $region81
    $region80: #{tpu_custom_call.1} parent=1 // pred_region
      %484 = dma.done [#allocation13], 128
    $region81: #{tpu_custom_call.1} parent=1 // pred_fallthru
      _
    // Predicated region
    $region82: #{tpu_custom_call.1} parent=1 // pred_check
      _
    $region83: #{tpu_custom_call.1} parent=1 // pred_check_branch
      %486 = sbr.rel (0) target = $region85
    $region84: #{tpu_custom_call.1} parent=1 // pred_region
      %487 = dma.done [#allocation5], 16
    $region85: #{tpu_custom_call.1} parent=1 // pred_fallthru
      _
    %488 = sfence
    %489 = vsyncpa [#allocation3], 1
    %490 = vsyncpa [#allocation7], 1
    %491 = vsyncpa [#allocation4], 1
    %492 = vsyncpa [#allocation10], 1
    %493 = vsyncpa [#allocation13], 1
    %494 = vsyncpa [#allocation5], 1

</llo_original>
